<compile_context>
chip_gen: v6e
topology: v6e:2x2x1
jax: 0.10.0
libtpu: 0.0.40
codegen_flags: <defaults>
</compile_context>

<pallas_src>
import numpy as np
import jax
import jax.numpy as jnp
from jax.experimental import pallas as pl
from jax.experimental.pallas import tpu as pltpu

LANE = 128   # lane width (last dim of hidden/output tiles)
SUB = 16     # bf16 sublane packing granularity


def _round_up(n: int, m: int) -> int:
    return ((n + m - 1) // m) * m


# ----------------------------- mask construction (host-side glue) -----------------------------

def _get_input_degrees(in_features: int) -> np.ndarray:
    return np.arange(1, in_features + 1)


def _hidden_degrees(out_features: int, autoregressive_features: int) -> np.ndarray:
    max_ = max(1, autoregressive_features - 1)
    min_ = min(1, autoregressive_features - 1)
    return np.arange(out_features) % max_ + min_


def _hidden_mask(in_degrees: np.ndarray, out_degrees: np.ndarray) -> np.ndarray:
    # mask[o, i] = 1 if out_deg[o] >= in_deg[i]
    return (out_degrees[:, None] >= in_degrees[None, :]).astype(np.float32)


def _output_mask(in_degrees: np.ndarray, features: int, output_multiplier: int):
    # tile() in the reference == np.repeat of the input degrees
    out_degrees = np.repeat(_get_input_degrees(features), output_multiplier)
    mask = (out_degrees[:, None] > in_degrees[None, :]).astype(np.float32)
    return mask, out_degrees


# ----------------------------------------- Pallas kernel -----------------------------------------

def made_kernel(
    x_ref,                      # (TB, F_pad)    bf16
    w0_ref, b0_ref,             # (F_pad, H_pad) bf16, (1, H_pad) f32
    w1_ref, b1_ref,             # (H_pad, H_pad) bf16, (1, H_pad) f32
    w2_ref, b2_ref,             # (H_pad, H_pad) bf16, (1, H_pad) f32
    wf_ref, bf_ref,             # (H_pad, O_pad) bf16, (1, O_pad) f32
    out_ref,                    # (TB, O_pad)    bf16
):
    # initial masked linear + ReLU   (weights are pre-masked & pre-transposed)
    h = jnp.dot(x_ref[...], w0_ref[...], preferred_element_type=jnp.float32) + b0_ref[...]
    h = jnp.maximum(h, 0.0)

    # masked feedforward block 0 (default config: no batch norm / dropout)
    h = jnp.dot(h.astype(jnp.bfloat16), w1_ref[...],
                preferred_element_type=jnp.float32) + b1_ref[...]
    h = jnp.maximum(h, 0.0)

    # masked feedforward block 1
    h = jnp.dot(h.astype(jnp.bfloat16), w2_ref[...],
                preferred_element_type=jnp.float32) + b2_ref[...]
    h = jnp.maximum(h, 0.0)

    # final masked linear (no activation); store bf16 to halve writeback bandwidth
    out = jnp.dot(h.astype(jnp.bfloat16), wf_ref[...],
                  preferred_element_type=jnp.float32) + bf_ref[...]
    out_ref[...] = out.astype(out_ref.dtype)


def made_forward(x, params, *, block_batch=512):
    """x: (batch, features) f32.  params: dict from build_params.  Returns (batch, out_dim) bf16."""
    batch, features = x.shape
    f_pad = params["w0t"].shape[0]
    h_pad = params["w1t"].shape[0]
    o_pad = params["wft"].shape[1]
    out_dim = params["out_dim"]

    # ---- batch tile selection: big tiles (fewer grid steps, M>=256 fills v6e/v7x MXU),
    #      but keep >=2 steps for v7x megacore when that doesn't shrink the tile below 256.
    tb = min(block_batch, _round_up(batch, SUB))
    tb = _round_up(tb, SUB)
    if _round_up(batch, tb) // tb < 2 and tb >= 512:
        tb = _round_up(tb // 2, SUB)
    b_pad = _round_up(batch, tb)

    # ---- input prep: cast to bf16; only pad when the shapes demand it (no wasted HBM round-trip)
    x_bf = x.astype(jnp.bfloat16)
    if batch == b_pad and features == f_pad:
        x_p = x_bf
    else:
        x_p = jnp.pad(x_bf, ((0, b_pad - batch), (0, f_pad - features)))

    grid = (b_pad // tb,)

    def resident(shape):
        # Constant index_map -> block stays VMEM-resident across the batch grid.
        # Single-buffered: it is never re-fetched, so double-buffering only wastes VMEM
        # (relevant at realistic hidden sizes on v7x's 64 MiB VMEM).
        return pl.BlockSpec(shape, lambda i: (0, 0), pipeline_mode=pl.Buffered(1))

    weight_bytes = sum(
        int(np.prod(params[k].shape)) * params[k].dtype.itemsize
        for k in ("w0t", "b0", "w1t", "b1", "w2t", "b2", "wft", "bf")
    )
    cost = pl.CostEstimate(
        flops=2 * b_pad * (f_pad * h_pad + 2 * h_pad * h_pad + h_pad * o_pad),
        transcendentals=0,
        bytes_accessed=b_pad * f_pad * 2 + weight_bytes + b_pad * o_pad * 2,
    )

    out_padded = pl.pallas_call(
        made_kernel,
        out_shape=jax.ShapeDtypeStruct((b_pad, o_pad), jnp.bfloat16),
        grid=grid,
        in_specs=[
            pl.BlockSpec((tb, f_pad), lambda i: (i, 0)),   # x tiles over batch (streaming)
            resident((f_pad, h_pad)), resident((1, h_pad)),
            resident((h_pad, h_pad)), resident((1, h_pad)),
            resident((h_pad, h_pad)), resident((1, h_pad)),
            resident((h_pad, o_pad)), resident((1, o_pad)),
        ],
        out_specs=pl.BlockSpec((tb, o_pad), lambda i: (i, 0)),
        compiler_params=pltpu.CompilerParams(
            dimension_semantics=("parallel",),
            vmem_limit_bytes=32 * 1024 * 1024,
        ),
        cost_estimate=cost,
    )(
        x_p,
        params["w0t"], params["b0"],
        params["w1t"], params["b1"],
        params["w2t"], params["b2"],
        params["wft"], params["bf"],
    )
    # strip batch + output-lane padding
    return out_padded[:batch, :out_dim]


# ----------------------------------------- parameter setup -----------------------------------------

def build_params(key, features, hidden_features, output_multiplier, num_blocks=2):
    assert num_blocks == 2, "kernel is written for the default num_blocks=2"

    in_deg = _get_input_degrees(features)
    h_deg = _hidden_degrees(hidden_features, features)

    m0 = _hidden_mask(in_deg, h_deg)                           # (hidden, features)
    m1 = _hidden_mask(h_deg, h_deg)                            # (hidden, hidden)
    m2 = _hidden_mask(h_deg, h_deg)                            # (hidden, hidden)
    mf, _ = _output_mask(h_deg, features, output_multiplier)   # (features*mult, hidden)

    out_dim = features * output_multiplier

    ks = jax.random.split(key, 8)
    scale = 0.1
    # NOTE: the reference zero-fills the output layer's weight/bias in __init__;
    # we init it with deterministic random values instead so the kernel compute
    # is non-trivial — the forward-pass math (mask * W @ x + b) is identical.
    w0 = scale * jax.random.normal(ks[0], (hidden_features, features), jnp.float32)
    b0 = scale * jax.random.normal(ks[1], (hidden_features,), jnp.float32)
    w1 = scale * jax.random.normal(ks[2], (hidden_features, hidden_features), jnp.float32)
    b1 = scale * jax.random.normal(ks[3], (hidden_features,), jnp.float32)
    w2 = scale * jax.random.normal(ks[4], (hidden_features, hidden_features), jnp.float32)
    b2 = scale * jax.random.normal(ks[5], (hidden_features,), jnp.float32)
    wf = scale * jax.random.normal(ks[6], (out_dim, hidden_features), jnp.float32)
    bf = scale * jax.random.normal(ks[7], (out_dim,), jnp.float32)

    # pre-masked weights in PyTorch (out, in) convention (f32, for the reference)
    mw0 = w0 * jnp.asarray(m0)
    mw1 = w1 * jnp.asarray(m1)
    mw2 = w2 * jnp.asarray(m2)
    mwf = wf * jnp.asarray(mf)

    # padded, pre-transposed (in, out), bf16 versions for the kernel:
    #   * features padded only to bf16 sublane size (16) -> small streaming x
    #   * hidden / output padded to lane width (128) -> lane-dense MXU tiles & stores
    f_pad = _round_up(features, SUB)
    h_pad = _round_up(hidden_features, LANE)
    o_pad = _round_up(out_dim, LANE)

    def pad_t(mw, rows, cols):
        t = jnp.zeros((rows, cols), jnp.float32)
        t = t.at[: mw.shape[1], : mw.shape[0]].set(mw.T)
        return t.astype(jnp.bfloat16)

    def pad_b(b, cols):
        p = jnp.zeros((1, cols), jnp.float32)
        return p.at[0, : b.shape[0]].set(b)

    return {
        # kernel-ready params (padded cols have zero weight AND zero bias -> exact padding)
        "w0t": pad_t(mw0, f_pad, h_pad), "b0": pad_b(b0, h_pad),
        "w1t": pad_t(mw1, h_pad, h_pad), "b1": pad_b(b1, h_pad),
        "w2t": pad_t(mw2, h_pad, h_pad), "b2": pad_b(b2, h_pad),
        "wft": pad_t(mwf, h_pad, o_pad), "bf": pad_b(bf, o_pad),
        "out_dim": out_dim,
        # f32 reference params (unpadded, PyTorch convention)
        "ref": {
            "mw0": mw0, "rb0": b0,
            "mw1": mw1, "rb1": b1,
            "mw2": mw2, "rb2": b2,
            "mwf": mwf, "rbf": bf,
        },
    }


def made_reference(x, params):
    """Pure-JAX f32 reference of the same forward pass (PyTorch F.linear convention)."""
    p = params["ref"]
    h = jnp.maximum(x @ p["mw0"].T + p["rb0"], 0.0)
    h = jnp.maximum(h @ p["mw1"].T + p["rb1"], 0.0)
    h = jnp.maximum(h @ p["mw2"].T + p["rb2"], 0.0)
    return h @ p["mwf"].T + p["rbf"]


# ---------------------------------------------- main ----------------------------------------------

if __name__ == "__main__":
    features = 8
    hidden_features = 32
    output_multiplier = 2
    batch = 256            # single 256-row tile (M>=256 fills the 256-wide MXU on v6e/v7x)

    key = jax.random.PRNGKey(0)
    k_x, k_p = jax.random.split(key)

    x = jax.random.normal(k_x, (batch, features), jnp.float32)
    params = build_params(k_p, features, hidden_features, output_multiplier)

    out = made_forward(x, params)
    out = jax.block_until_ready(out)

    ref = made_reference(x, params)
    # bf16 matmul path + bf16 output store vs f32 reference -> relaxed tolerance
    np.testing.assert_allclose(np.asarray(out, dtype=np.float32), np.asarray(ref),
                               rtol=2e-2, atol=2e-2)

    print("KERNEL_OK")
</pallas_src>

<mosaic_0001>
module attributes {stable_mosaic.version = 11 : i64} {
  func.func @made_kernel(%arg0: i32, %arg1: memref<256x16xbf16, #tpu.memory_space<vmem>>, %arg2: memref<16x128xbf16, #tpu.memory_space<vmem>>, %arg3: memref<1x128xf32, #tpu.memory_space<vmem>>, %arg4: memref<128x128xbf16, #tpu.memory_space<vmem>>, %arg5: memref<1x128xf32, #tpu.memory_space<vmem>>, %arg6: memref<128x128xbf16, #tpu.memory_space<vmem>>, %arg7: memref<1x128xf32, #tpu.memory_space<vmem>>, %arg8: memref<128x128xbf16, #tpu.memory_space<vmem>>, %arg9: memref<1x128xf32, #tpu.memory_space<vmem>>, %arg10: memref<256x128xbf16, #tpu.memory_space<vmem>>) attributes {dimension_semantics = [#tpu.dimension_semantics<parallel>], iteration_bounds = array<i64: 1>, scalar_prefetch = 0 : i64, scratch_operands = 0 : i64, tpu.core_type = #tpu.core_type<tc>, window_params = [{transform_indices = @transform_0, window_bounds = array<i64: 256, 16>}, {pipeline_mode = #tpu.pipeline_mode<synchronous>, transform_indices = @transform_1, window_bounds = array<i64: 16, 128>}, {pipeline_mode = #tpu.pipeline_mode<synchronous>, transform_indices = @transform_2, window_bounds = array<i64: 1, 128>}, {pipeline_mode = #tpu.pipeline_mode<synchronous>, transform_indices = @transform_3, window_bounds = array<i64: 128, 128>}, {pipeline_mode = #tpu.pipeline_mode<synchronous>, transform_indices = @transform_4, window_bounds = array<i64: 1, 128>}, {pipeline_mode = #tpu.pipeline_mode<synchronous>, transform_indices = @transform_5, window_bounds = array<i64: 128, 128>}, {pipeline_mode = #tpu.pipeline_mode<synchronous>, transform_indices = @transform_6, window_bounds = array<i64: 1, 128>}, {pipeline_mode = #tpu.pipeline_mode<synchronous>, transform_indices = @transform_7, window_bounds = array<i64: 128, 128>}, {pipeline_mode = #tpu.pipeline_mode<synchronous>, transform_indices = @transform_8, window_bounds = array<i64: 1, 128>}, {transform_indices = @transform_9, window_bounds = array<i64: 256, 128>}]} {
    %c0 = arith.constant 0 : index
    %c0_0 = arith.constant 0 : index
    %0 = vector.load %arg1[%c0, %c0_0] : memref<256x16xbf16, #tpu.memory_space<vmem>>, vector<256x16xbf16>
    %c0_1 = arith.constant 0 : index
    %c0_2 = arith.constant 0 : index
    %1 = vector.load %arg2[%c0_1, %c0_2] : memref<16x128xbf16, #tpu.memory_space<vmem>>, vector<16x128xbf16>
    %cst = arith.constant dense<0.000000e+00> : vector<256x128xf32>
    %2 = tpu.matmul %0, %1, %cst {dimension_numbers = #tpu.dot_dimension_numbers<[1], [0], [0], [1], [0, 0, 1, 1], [], []>} : vector<256x16xbf16>, vector<16x128xbf16>, vector<256x128xf32> -> vector<256x128xf32>
    %c0_3 = arith.constant 0 : index
    %c0_4 = arith.constant 0 : index
    %3 = vector.load %arg3[%c0_3, %c0_4] : memref<1x128xf32, #tpu.memory_space<vmem>>, vector<1x128xf32>
    %4 = vector.broadcast %3 : vector<1x128xf32> to vector<256x128xf32>
    %5 = arith.addf %2, %4 : vector<256x128xf32>
    %cst_5 = arith.constant 0.000000e+00 : f32
    %6 = vector.broadcast %cst_5 : f32 to vector<256x128xf32>
    %7 = arith.maximumf %5, %6 : vector<256x128xf32>
    %8 = arith.truncf %7 : vector<256x128xf32> to vector<256x128xbf16>
    %c0_6 = arith.constant 0 : index
    %c0_7 = arith.constant 0 : index
    %9 = vector.load %arg4[%c0_6, %c0_7] : memref<128x128xbf16, #tpu.memory_space<vmem>>, vector<128x128xbf16>
    %cst_8 = arith.constant dense<0.000000e+00> : vector<256x128xf32>
    %10 = tpu.matmul %8, %9, %cst_8 {dimension_numbers = #tpu.dot_dimension_numbers<[1], [0], [0], [1], [0, 0, 1, 1], [], []>} : vector<256x128xbf16>, vector<128x128xbf16>, vector<256x128xf32> -> vector<256x128xf32>
    %c0_9 = arith.constant 0 : index
    %c0_10 = arith.constant 0 : index
    %11 = vector.load %arg5[%c0_9, %c0_10] : memref<1x128xf32, #tpu.memory_space<vmem>>, vector<1x128xf32>
    %12 = vector.broadcast %11 : vector<1x128xf32> to vector<256x128xf32>
    %13 = arith.addf %10, %12 : vector<256x128xf32>
    %cst_11 = arith.constant 0.000000e+00 : f32
    %14 = vector.broadcast %cst_11 : f32 to vector<256x128xf32>
    %15 = arith.maximumf %13, %14 : vector<256x128xf32>
    %16 = arith.truncf %15 : vector<256x128xf32> to vector<256x128xbf16>
    %c0_12 = arith.constant 0 : index
    %c0_13 = arith.constant 0 : index
    %17 = vector.load %arg6[%c0_12, %c0_13] : memref<128x128xbf16, #tpu.memory_space<vmem>>, vector<128x128xbf16>
    %cst_14 = arith.constant dense<0.000000e+00> : vector<256x128xf32>
    %18 = tpu.matmul %16, %17, %cst_14 {dimension_numbers = #tpu.dot_dimension_numbers<[1], [0], [0], [1], [0, 0, 1, 1], [], []>} : vector<256x128xbf16>, vector<128x128xbf16>, vector<256x128xf32> -> vector<256x128xf32>
    %c0_15 = arith.constant 0 : index
    %c0_16 = arith.constant 0 : index
    %19 = vector.load %arg7[%c0_15, %c0_16] : memref<1x128xf32, #tpu.memory_space<vmem>>, vector<1x128xf32>
    %20 = vector.broadcast %19 : vector<1x128xf32> to vector<256x128xf32>
    %21 = arith.addf %18, %20 : vector<256x128xf32>
    %cst_17 = arith.constant 0.000000e+00 : f32
    %22 = vector.broadcast %cst_17 : f32 to vector<256x128xf32>
    %23 = arith.maximumf %21, %22 : vector<256x128xf32>
    %24 = arith.truncf %23 : vector<256x128xf32> to vector<256x128xbf16>
    %c0_18 = arith.constant 0 : index
    %c0_19 = arith.constant 0 : index
    %25 = vector.load %arg8[%c0_18, %c0_19] : memref<128x128xbf16, #tpu.memory_space<vmem>>, vector<128x128xbf16>
    %cst_20 = arith.constant dense<0.000000e+00> : vector<256x128xf32>
    %26 = tpu.matmul %24, %25, %cst_20 {dimension_numbers = #tpu.dot_dimension_numbers<[1], [0], [0], [1], [0, 0, 1, 1], [], []>} : vector<256x128xbf16>, vector<128x128xbf16>, vector<256x128xf32> -> vector<256x128xf32>
    %c0_21 = arith.constant 0 : index
    %c0_22 = arith.constant 0 : index
    %27 = vector.load %arg9[%c0_21, %c0_22] : memref<1x128xf32, #tpu.memory_space<vmem>>, vector<1x128xf32>
    %28 = vector.broadcast %27 : vector<1x128xf32> to vector<256x128xf32>
    %29 = arith.addf %26, %28 : vector<256x128xf32>
    %30 = arith.truncf %29 : vector<256x128xf32> to vector<256x128xbf16>
    %c0_23 = arith.constant 0 : index
    %c0_24 = arith.constant 0 : index
    %31 = vector.load %arg10[%c0_23, %c0_24] : memref<256x128xbf16, #tpu.memory_space<vmem>>, vector<256x128xbf16>
    tpu.vector_store %arg10[%c0_23, %c0_24], %30 {strides = array<i32>} : memref<256x128xbf16, #tpu.memory_space<vmem>>, vector<256x128xbf16>,
    return
  }
  func.func @transform_0(%arg0: i32) -> (i32, i32) {
    %c0_i32 = arith.constant 0 : i32
    %c0_i32_0 = arith.constant 0 : i32
    return %arg0, %c0_i32 : i32, i32
  }
  func.func @transform_1(%arg0: i32) -> (i32, i32) {
    %c0_i32 = arith.constant 0 : i32
    %c0_i32_0 = arith.constant 0 : i32
    %c0_i32_1 = arith.constant 0 : i32
    return %c0_i32, %c0_i32_0 : i32, i32
  }
  func.func @transform_2(%arg0: i32) -> (i32, i32) {
    %c0_i32 = arith.constant 0 : i32
    %c0_i32_0 = arith.constant 0 : i32
    %c0_i32_1 = arith.constant 0 : i32
    return %c0_i32, %c0_i32_0 : i32, i32
  }
  func.func @transform_3(%arg0: i32) -> (i32, i32) {
    %c0_i32 = arith.constant 0 : i32
    %c0_i32_0 = arith.constant 0 : i32
    %c0_i32_1 = arith.constant 0 : i32
    return %c0_i32, %c0_i32_0 : i32, i32
  }
  func.func @transform_4(%arg0: i32) -> (i32, i32) {
    %c0_i32 = arith.constant 0 : i32
    %c0_i32_0 = arith.constant 0 : i32
    %c0_i32_1 = arith.constant 0 : i32
    return %c0_i32, %c0_i32_0 : i32, i32
  }
  func.func @transform_5(%arg0: i32) -> (i32, i32) {
    %c0_i32 = arith.constant 0 : i32
    %c0_i32_0 = arith.constant 0 : i32
    %c0_i32_1 = arith.constant 0 : i32
    return %c0_i32, %c0_i32_0 : i32, i32
  }
  func.func @transform_6(%arg0: i32) -> (i32, i32) {
    %c0_i32 = arith.constant 0 : i32
    %c0_i32_0 = arith.constant 0 : i32
    %c0_i32_1 = arith.constant 0 : i32
    return %c0_i32, %c0_i32_0 : i32, i32
  }
  func.func @transform_7(%arg0: i32) -> (i32, i32) {
    %c0_i32 = arith.constant 0 : i32
    %c0_i32_0 = arith.constant 0 : i32
    %c0_i32_1 = arith.constant 0 : i32
    return %c0_i32, %c0_i32_0 : i32, i32
  }
  func.func @transform_8(%arg0: i32) -> (i32, i32) {
    %c0_i32 = arith.constant 0 : i32
    %c0_i32_0 = arith.constant 0 : i32
    %c0_i32_1 = arith.constant 0 : i32
    return %c0_i32, %c0_i32_0 : i32, i32
  }
  func.func @transform_9(%arg0: i32) -> (i32, i32) {
    %c0_i32 = arith.constant 0 : i32
    %c0_i32_0 = arith.constant 0 : i32
    return %arg0, %c0_i32 : i32, i32
  }
}

</mosaic_0001>

<llo_original>
// kernel: tpu_custom_call.1
$region0: #{tpu_custom_call.1}
  #allocation0 [shape = 'u32[]', space=smem, size = 0x4, offset = 0x4, fixed_abs, tag = 'smem constant byte address 0x4 - core index']
  #allocation1 [shape = 'u32[144,128]{1,0:T(1,128)}', space=vmem, size = 0x12000, scoped, tag = 'internal scratch']
  %s0 = inlined_call_operand.vmem [shape: bf16[256,16], index: 0, kind: input, shape index: {}]
  %s1 = inlined_call_operand.vmem [shape: bf16[16,128], index: 1, kind: input, shape index: {}]
  %s2 = inlined_call_operand.vmem [shape: f32[1,128], index: 2, kind: input, shape index: {}]
  %s3 = inlined_call_operand.vmem [shape: bf16[128,128], index: 3, kind: input, shape index: {}]
  %s4 = inlined_call_operand.vmem [shape: f32[1,128], index: 4, kind: input, shape index: {}]
  %s5 = inlined_call_operand.vmem [shape: bf16[128,128], index: 5, kind: input, shape index: {}]
  %s6 = inlined_call_operand.vmem [shape: f32[1,128], index: 6, kind: input, shape index: {}]
  %s7 = inlined_call_operand.hbm [shape: bf16[128,128], index: 7, kind: input, shape index: {}]
  %s8 = inlined_call_operand.vmem [shape: f32[1,128], index: 8, kind: input, shape index: {}]
  %s9 = inlined_call_operand.hbm [shape: bf16[256,128], index: 9, kind: output, shape index: {}]
  %s10 = sld [smem:[#allocation0]]
  $region50: #{tpu_custom_call.1} parent=0
    _
  %s12 = ssub.s32 1, %s10
  %s13 = scalar_select 0, %s12, %s10
  $region1: #{tpu_custom_call.1} parent=0
    #allocation2 [shape = 'u8[32768]{0}', space=vmem, size = 0x8000, scoped, tag = 'input window, operand 7, single buffered']
    #allocation3 [shape = 's32[1]{0}', space=sflag, size = 0x4, scoped, tag = 'scoped memory for tpu_custom_call.1']
    #allocation4 [shape = 's32[1]{0}', space=sflag, size = 0x4, scoped, tag = 'scoped memory for tpu_custom_call.1']
    #allocation5 [shape = 'u8[65536]{0}', space=vmem, size = 0x10000, scoped, tag = 'output window, operand 0, single buffered']
    %14 = vsyncpa [#allocation3], 0
    %15 = vsyncpa [#allocation4], 0
    // Predicated region
    $region2: #{tpu_custom_call.1} parent=1 // pred_check
      _
    $region3: #{tpu_custom_call.1} parent=1 // pred_check_branch
      %17 = sbr.rel (0) target = $region5
    $region4: #{tpu_custom_call.1} parent=1 // pred_region
      _
    $region5: #{tpu_custom_call.1} parent=1 // pred_fallthru
      _
    // Predicated region
    $region6: #{tpu_custom_call.1} parent=1 // pred_check
      _
    $region7: #{tpu_custom_call.1} parent=1 // pred_check_branch
      %19 = sbr.rel (0) target = $region9
    $region8: #{tpu_custom_call.1} parent=1 // pred_region
      _
    $region9: #{tpu_custom_call.1} parent=1 // pred_fallthru
      _
    // Predicated region
    $region10: #{tpu_custom_call.1} parent=1 // pred_check
      _
    $region11: #{tpu_custom_call.1} parent=1 // pred_check_branch
      %21 = sbr.rel (0) target = $region13
    $region12: #{tpu_custom_call.1} parent=1 // pred_region
      _
    $region13: #{tpu_custom_call.1} parent=1 // pred_fallthru
      _
    // Predicated region
    $region14: #{tpu_custom_call.1} parent=1 // pred_check
      _
    $region15: #{tpu_custom_call.1} parent=1 // pred_check_branch
      %23 = sbr.rel (0) target = $region17
    $region16: #{tpu_custom_call.1} parent=1 // pred_region
      _
    $region17: #{tpu_custom_call.1} parent=1 // pred_fallthru
      _
    // Predicated region
    $region18: #{tpu_custom_call.1} parent=1 // pred_check
      _
    $region19: #{tpu_custom_call.1} parent=1 // pred_check_branch
      %25 = sbr.rel (0) target = $region21
    $region20: #{tpu_custom_call.1} parent=1 // pred_region
      _
    $region21: #{tpu_custom_call.1} parent=1 // pred_fallthru
      _
    // Predicated region
    $region22: #{tpu_custom_call.1} parent=1 // pred_check
      _
    $region23: #{tpu_custom_call.1} parent=1 // pred_check_branch
      %27 = sbr.rel (0) target = $region25
    $region24: #{tpu_custom_call.1} parent=1 // pred_region
      _
    $region25: #{tpu_custom_call.1} parent=1 // pred_fallthru
      _
    // Predicated region
    $region26: #{tpu_custom_call.1} parent=1 // pred_check
      _
    $region27: #{tpu_custom_call.1} parent=1 // pred_check_branch
      %29 = sbr.rel (0) target = $region29
    $region28: #{tpu_custom_call.1} parent=1 // pred_region
      _
    $region29: #{tpu_custom_call.1} parent=1 // pred_fallthru
      _
    // Predicated region
    $region30: #{tpu_custom_call.1} parent=1 // pred_check
      _
    $region31: #{tpu_custom_call.1} parent=1 // pred_check_branch
      %31 = sbr.rel (0) target = $region33
    $region32: #{tpu_custom_call.1} parent=1 // pred_region
      %s33 = ssub.s32 1024, 1024
      %34 = vsyncadd [#allocation3], %s33
      %s35 = sshll.u32 [#allocation2], 4
      %s36 = int_to_ptr.vmem [resolvable:$true] %s35
      %41 = dma.hbm_to_vmem [thread:$0]  %s7, 1024, %s36, [#allocation3], 64, 64, 4
    $region33: #{tpu_custom_call.1} parent=1 // pred_fallthru
      _
    // Predicated region
    $region34: #{tpu_custom_call.1} parent=1 // pred_check
      _
    $region35: #{tpu_custom_call.1} parent=1 // pred_check_branch
      %43 = sbr.rel (0) target = $region37
    $region36: #{tpu_custom_call.1} parent=1 // pred_region
      _
    $region37: #{tpu_custom_call.1} parent=1 // pred_fallthru
      _
    // Predicated region
    $region38: #{tpu_custom_call.1} parent=1 // pred_check
      _
    $region39: #{tpu_custom_call.1} parent=1 // pred_check_branch
      %45 = sbr.rel (0) target = $region41
    $region40: #{tpu_custom_call.1} parent=1 // pred_region
      %46 = dma.done [#allocation3], 1024
    $region41: #{tpu_custom_call.1} parent=1 // pred_fallthru
      _
    %v48 = vld [vmem:[%s0] sm:$0xf]
    %v49 = vld [vmem:[%s0 + $0x4] sm:$0xf]
    %v50 = vld [vmem:[%s0 + $0x8] sm:$0xf]
    %v51 = vld [vmem:[%s0 + $0xc] sm:$0xf]
    %v52 = vld [vmem:[%s0 + $0x10] sm:$0xf]
    %v53 = vld [vmem:[%s0 + $0x14] sm:$0xf]
    %v54 = vld [vmem:[%s0 + $0x18] sm:$0xf]
    %v55 = vld [vmem:[%s0 + $0x1c] sm:$0xf]
    %v56 = vld [vmem:[%s0 + $0x20] sm:$0xf]
    %v57 = vld [vmem:[%s0 + $0x24] sm:$0xf]
    %v58 = vld [vmem:[%s0 + $0x28] sm:$0xf]
    %v59 = vld [vmem:[%s0 + $0x2c] sm:$0xf]
    %v60 = vld [vmem:[%s0 + $0x30] sm:$0xf]
    %v61 = vld [vmem:[%s0 + $0x34] sm:$0xf]
    %v62 = vld [vmem:[%s0 + $0x38] sm:$0xf]
    %v63 = vld [vmem:[%s0 + $0x3c] sm:$0xf]
    %v64 = vld [vmem:[%s0 + $0x40] sm:$0xf]
    %v65 = vld [vmem:[%s0 + $0x44] sm:$0xf]
    %v66 = vld [vmem:[%s0 + $0x48] sm:$0xf]
    %v67 = vld [vmem:[%s0 + $0x4c] sm:$0xf]
    %v68 = vld [vmem:[%s0 + $0x50] sm:$0xf]
    %v69 = vld [vmem:[%s0 + $0x54] sm:$0xf]
    %v70 = vld [vmem:[%s0 + $0x58] sm:$0xf]
    %v71 = vld [vmem:[%s0 + $0x5c] sm:$0xf]
    %v72 = vld [vmem:[%s0 + $0x60] sm:$0xf]
    %v73 = vld [vmem:[%s0 + $0x64] sm:$0xf]
    %v74 = vld [vmem:[%s0 + $0x68] sm:$0xf]
    %v75 = vld [vmem:[%s0 + $0x6c] sm:$0xf]
    %v76 = vld [vmem:[%s0 + $0x70] sm:$0xf]
    %v77 = vld [vmem:[%s0 + $0x74] sm:$0xf]
    %v78 = vld [vmem:[%s0 + $0x78] sm:$0xf]
    %v79 = vld [vmem:[%s0 + $0x7c] sm:$0xf]
    %v80 = vld [vmem:[%s1] sm:$0xf]
    %v81 = vld [vmem:[%s1 + $0x4] sm:$0xf]
    %v82 = vld [vmem:[%s2] sm:$0x1]
    %v84 = vlaneseq
    %v85 = vshrl.u32 %v84, 7
    %v86 = vsub.s32 0, %v85
    %v87 = vrot.slane %v82, %v86
    %v121 = vunpack.c.l.b16 %v48
    %v122 = vunpack.c.l.b16 %v49
    %v123 = vunpack.c.l.b16 %v50
    %v124 = vunpack.c.l.b16 %v51
    %v125 = vunpack.c.l.b16 %v52
    %v126 = vunpack.c.l.b16 %v53
    %v127 = vunpack.c.l.b16 %v54
    %v128 = vunpack.c.l.b16 %v55
    %v129 = vunpack.c.l.b16 %v56
    %v130 = vunpack.c.l.b16 %v57
    %v131 = vunpack.c.l.b16 %v58
    %v132 = vunpack.c.l.b16 %v59
    %v133 = vunpack.c.l.b16 %v60
    %v134 = vunpack.c.l.b16 %v61
    %v135 = vunpack.c.l.b16 %v62
    %v136 = vunpack.c.l.b16 %v63
    %v137 = vunpack.c.l.b16 %v64
    %v138 = vunpack.c.l.b16 %v65
    %v139 = vunpack.c.l.b16 %v66
    %v140 = vunpack.c.l.b16 %v67
    %v141 = vunpack.c.l.b16 %v68
    %v142 = vunpack.c.l.b16 %v69
    %v143 = vunpack.c.l.b16 %v70
    %v144 = vunpack.c.l.b16 %v71
    %v145 = vunpack.c.l.b16 %v72
    %v146 = vunpack.c.l.b16 %v73
    %v147 = vunpack.c.l.b16 %v74
    %v148 = vunpack.c.l.b16 %v75
    %v149 = vunpack.c.l.b16 %v76
    %v150 = vunpack.c.l.b16 %v77
    %v151 = vunpack.c.l.b16 %v78
    %v152 = vunpack.c.l.b16 %v79
    %v153 = vpack.c.b16 %v122, %v121
    %v154 = vpack.c.b16 %v124, %v123
    %v155 = vpack.c.b16 %v126, %v125
    %v156 = vpack.c.b16 %v128, %v127
    %v157 = vpack.c.b16 %v130, %v129
    %v158 = vpack.c.b16 %v132, %v131
    %v159 = vpack.c.b16 %v134, %v133
    %v160 = vpack.c.b16 %v136, %v135
    %v161 = vpack.c.b16 %v138, %v137
    %v162 = vpack.c.b16 %v140, %v139
    %v163 = vpack.c.b16 %v142, %v141
    %v164 = vpack.c.b16 %v144, %v143
    %v165 = vpack.c.b16 %v146, %v145
    %v166 = vpack.c.b16 %v148, %v147
    %v167 = vpack.c.b16 %v150, %v149
    %v168 = vpack.c.b16 %v152, %v151
    %v171 = vunpack.c.l.b16 %v80
    %v172 = vunpack.c.l.b16 %v81
    %v173 = vpack.c.b16 %v172, %v171
    %vm175 = vcmask 130048
    %v177 = vsel %vm175, %v153, 0
    %v180 = vsel %vm175, %v154, 0
    %v183 = vsel %vm175, %v155, 0
    %v186 = vsel %vm175, %v156, 0
    %v189 = vsel %vm175, %v157, 0
    %v192 = vsel %vm175, %v158, 0
    %v195 = vsel %vm175, %v159, 0
    %v198 = vsel %vm175, %v160, 0
    %v201 = vsel %vm175, %v161, 0
    %v204 = vsel %vm175, %v162, 0
    %v207 = vsel %vm175, %v163, 0
    %v210 = vsel %vm175, %v164, 0
    %v213 = vsel %vm175, %v165, 0
    %v216 = vsel %vm175, %v166, 0
    %v219 = vsel %vm175, %v167, 0
    %v222 = vsel %vm175, %v168, 0
    %224 = vmatprep.subr.bf16.mxu0 0
    %225 = vmatpush1.bf16.msra.mxu0 0
    %226 = vmatprep.subr.bf16.mxu0 0
    %227 = vmatpush1.bf16.msra.mxu0 0
    %228 = vmatprep.subr.bf16.mxu0 0
    %229 = vmatpush1.bf16.msra.mxu0 0
    %230 = vmatprep.subr.bf16.mxu0 0
    %231 = vmatpush1.bf16.msra.mxu0 0
    %232 = vmatprep.subr.bf16.mxu0 0
    %233 = vmatpush1.bf16.msra.mxu0 0
    %234 = vmatprep.subr.bf16.mxu0 0
    %235 = vmatpush1.bf16.msra.mxu0 0
    %236 = vmatprep.subr.bf16.mxu0 0
    %237 = vmatpush1.bf16.msra.mxu0 0
    %238 = vmatprep.subr.bf16.mxu0 0
    %239 = vmatpush1.bf16.msra.mxu0 %v173
    %240 = vmatprep.subr.bf16.mxu0 0
    %241 = vmatpush2.bf16.msra.mxu0 0
    %242 = vmatprep.subr.bf16.mxu0 0
    %243 = vmatpush2.bf16.msra.mxu0 0
    %244 = vmatprep.subr.bf16.mxu0 0
    %245 = vmatpush2.bf16.msra.mxu0 0
    %246 = vmatprep.subr.bf16.mxu0 0
    %247 = vmatpush2.bf16.msra.mxu0 0
    %248 = vmatprep.subr.bf16.mxu0 0
    %249 = vmatpush2.bf16.msra.mxu0 0
    %250 = vmatprep.subr.bf16.mxu0 0
    %251 = vmatpush2.bf16.msra.mxu0 0
    %252 = vmatprep.subr.bf16.mxu0 0
    %253 = vmatpush2.bf16.msra.mxu0 0
    %254 = vmatprep.subr.bf16.mxu0 0
    %255 = vmatpush2.bf16.msra.mxu0 0
    %256 = vmatprep.mubr.bf16.mxu0 0
    %257 = vmatmul.mubr.bf16.gmra.mxu0 %v177
    %v258 = vpop.f32.mrf.mxu0
    %v259 = vadd.f32 %v87, %v258
    %v260 = vpop.f32.mrf.mxu0
    %v261 = vpop.f32.mrf.mxu0
    %v262 = vadd.f32 %v87, %v261
    %v263 = vpop.f32.mrf.mxu0
    %264 = vmatprep.mubr.bf16.mxu0 0
    %265 = vmatmul.mubr.bf16.gmra.mxu0 %v180
    %v266 = vpop.f32.mrf.mxu0
    %v267 = vadd.f32 %v87, %v266
    %v268 = vpop.f32.mrf.mxu0
    %v269 = vpop.f32.mrf.mxu0
    %v270 = vadd.f32 %v87, %v269
    %v271 = vpop.f32.mrf.mxu0
    %272 = vmatprep.mubr.bf16.mxu0 0
    %273 = vmatmul.mubr.bf16.gmra.mxu0 %v183
    %v274 = vpop.f32.mrf.mxu0
    %v275 = vadd.f32 %v87, %v274
    %v276 = vpop.f32.mrf.mxu0
    %v277 = vpop.f32.mrf.mxu0
    %v278 = vadd.f32 %v87, %v277
    %v279 = vpop.f32.mrf.mxu0
    %280 = vmatprep.mubr.bf16.mxu0 0
    %281 = vmatmul.mubr.bf16.gmra.mxu0 %v186
    %v282 = vpop.f32.mrf.mxu0
    %v283 = vadd.f32 %v87, %v282
    %v284 = vpop.f32.mrf.mxu0
    %v285 = vpop.f32.mrf.mxu0
    %v286 = vadd.f32 %v87, %v285
    %v287 = vpop.f32.mrf.mxu0
    %288 = vmatprep.mubr.bf16.mxu0 0
    %289 = vmatmul.mubr.bf16.gmra.mxu0 %v189
    %v290 = vpop.f32.mrf.mxu0
    %v291 = vadd.f32 %v87, %v290
    %v292 = vpop.f32.mrf.mxu0
    %v293 = vpop.f32.mrf.mxu0
    %v294 = vadd.f32 %v87, %v293
    %v295 = vpop.f32.mrf.mxu0
    %296 = vmatprep.mubr.bf16.mxu0 0
    %297 = vmatmul.mubr.bf16.gmra.mxu0 %v192
    %v298 = vpop.f32.mrf.mxu0
    %v299 = vadd.f32 %v87, %v298
    %v300 = vpop.f32.mrf.mxu0
    %v301 = vpop.f32.mrf.mxu0
    %v302 = vadd.f32 %v87, %v301
    %v303 = vpop.f32.mrf.mxu0
    %304 = vmatprep.mubr.bf16.mxu0 0
    %305 = vmatmul.mubr.bf16.gmra.mxu0 %v195
    %v306 = vpop.f32.mrf.mxu0
    %v307 = vadd.f32 %v87, %v306
    %v308 = vpop.f32.mrf.mxu0
    %v309 = vpop.f32.mrf.mxu0
    %v310 = vadd.f32 %v87, %v309
    %v311 = vpop.f32.mrf.mxu0
    %312 = vmatprep.mubr.bf16.mxu0 0
    %313 = vmatmul.mubr.bf16.gmra.mxu0 %v198
    %v314 = vpop.f32.mrf.mxu0
    %v315 = vadd.f32 %v87, %v314
    %v316 = vpop.f32.mrf.mxu0
    %v317 = vpop.f32.mrf.mxu0
    %v318 = vadd.f32 %v87, %v317
    %v319 = vpop.f32.mrf.mxu0
    %320 = vmatprep.mubr.bf16.mxu0 0
    %321 = vmatmul.mubr.bf16.gmra.mxu0 %v201
    %v322 = vpop.f32.mrf.mxu0
    %v323 = vadd.f32 %v87, %v322
    %v324 = vpop.f32.mrf.mxu0
    %v325 = vpop.f32.mrf.mxu0
    %v326 = vadd.f32 %v87, %v325
    %v327 = vpop.f32.mrf.mxu0
    %328 = vmatprep.mubr.bf16.mxu0 0
    %329 = vmatmul.mubr.bf16.gmra.mxu0 %v204
    %v330 = vpop.f32.mrf.mxu0
    %v331 = vadd.f32 %v87, %v330
    %v332 = vpop.f32.mrf.mxu0
    %v333 = vpop.f32.mrf.mxu0
    %v334 = vadd.f32 %v87, %v333
    %v335 = vpop.f32.mrf.mxu0
    %336 = vmatprep.mubr.bf16.mxu0 0
    %337 = vmatmul.mubr.bf16.gmra.mxu0 %v207
    %v338 = vpop.f32.mrf.mxu0
    %v339 = vadd.f32 %v87, %v338
    %v340 = vpop.f32.mrf.mxu0
    %v341 = vpop.f32.mrf.mxu0
    %v342 = vadd.f32 %v87, %v341
    %v343 = vpop.f32.mrf.mxu0
    %344 = vmatprep.mubr.bf16.mxu0 0
    %345 = vmatmul.mubr.bf16.gmra.mxu0 %v210
    %v346 = vpop.f32.mrf.mxu0
    %v347 = vadd.f32 %v87, %v346
    %v348 = vpop.f32.mrf.mxu0
    %v349 = vpop.f32.mrf.mxu0
    %v350 = vadd.f32 %v87, %v349
    %v351 = vpop.f32.mrf.mxu0
    %352 = vmatprep.mubr.bf16.mxu0 0
    %353 = vmatmul.mubr.bf16.gmra.mxu0 %v213
    %v354 = vpop.f32.mrf.mxu0
    %v355 = vadd.f32 %v87, %v354
    %v356 = vpop.f32.mrf.mxu0
    %v357 = vpop.f32.mrf.mxu0
    %v358 = vadd.f32 %v87, %v357
    %v359 = vpop.f32.mrf.mxu0
    %360 = vmatprep.mubr.bf16.mxu0 0
    %361 = vmatmul.mubr.bf16.gmra.mxu0 %v216
    %v362 = vpop.f32.mrf.mxu0
    %v363 = vadd.f32 %v87, %v362
    %v364 = vpop.f32.mrf.mxu0
    %v365 = vpop.f32.mrf.mxu0
    %v366 = vadd.f32 %v87, %v365
    %v367 = vpop.f32.mrf.mxu0
    %368 = vmatprep.mubr.bf16.mxu0 0
    %369 = vmatmul.mubr.bf16.gmra.mxu0 %v219
    %v370 = vpop.f32.mrf.mxu0
    %v371 = vadd.f32 %v87, %v370
    %v372 = vpop.f32.mrf.mxu0
    %v373 = vpop.f32.mrf.mxu0
    %v374 = vadd.f32 %v87, %v373
    %v375 = vpop.f32.mrf.mxu0
    %376 = vmatprep.mubr.bf16.mxu0 0
    %377 = vmatmul.mubr.bf16.gmra.mxu0 %v222
    %v378 = vpop.f32.mrf.mxu0
    %v379 = vadd.f32 %v87, %v378
    %v380 = vpop.f32.mrf.mxu0
    %v381 = vpop.f32.mrf.mxu0
    %v382 = vadd.f32 %v87, %v381
    %v383 = vpop.f32.mrf.mxu0
    %384 = vdwg.mxu0
    %v385 = vmax.f32 %v259, 0.0
    %v386 = vmax.f32 %v262, 0.0
    %v387 = vmax.f32 %v267, 0.0
    %v388 = vmax.f32 %v270, 0.0
    %v389 = vmax.f32 %v275, 0.0
    %v390 = vmax.f32 %v278, 0.0
    %v391 = vmax.f32 %v283, 0.0
    %v392 = vmax.f32 %v286, 0.0
    %v393 = vmax.f32 %v291, 0.0
    %v394 = vmax.f32 %v294, 0.0
    %v395 = vmax.f32 %v299, 0.0
    %v396 = vmax.f32 %v302, 0.0
    %v397 = vmax.f32 %v307, 0.0
    %v398 = vmax.f32 %v310, 0.0
    %v399 = vmax.f32 %v315, 0.0
    %v400 = vmax.f32 %v318, 0.0
    %v401 = vmax.f32 %v323, 0.0
    %v402 = vmax.f32 %v326, 0.0
    %v403 = vmax.f32 %v331, 0.0
    %v404 = vmax.f32 %v334, 0.0
    %v405 = vmax.f32 %v339, 0.0
    %v406 = vmax.f32 %v342, 0.0
    %v407 = vmax.f32 %v347, 0.0
    %v408 = vmax.f32 %v350, 0.0
    %v409 = vmax.f32 %v355, 0.0
    %v410 = vmax.f32 %v358, 0.0
    %v411 = vmax.f32 %v363, 0.0
    %v412 = vmax.f32 %v366, 0.0
    %v413 = vmax.f32 %v371, 0.0
    %v414 = vmax.f32 %v374, 0.0
    %v415 = vmax.f32 %v379, 0.0
    %v416 = vmax.f32 %v382, 0.0
    %v417 = vpack.c.bf16 %v386, %v385
    %v418 = vpack.c.bf16 %v388, %v387
    %v419 = vpack.c.bf16 %v390, %v389
    %v420 = vpack.c.bf16 %v392, %v391
    %v421 = vpack.c.bf16 %v394, %v393
    %v422 = vpack.c.bf16 %v396, %v395
    %v423 = vpack.c.bf16 %v398, %v397
    %v424 = vpack.c.bf16 %v400, %v399
    %v425 = vpack.c.bf16 %v402, %v401
    %v426 = vpack.c.bf16 %v404, %v403
    %v427 = vpack.c.bf16 %v406, %v405
    %v428 = vpack.c.bf16 %v408, %v407
    %v429 = vpack.c.bf16 %v410, %v409
    %v430 = vpack.c.bf16 %v412, %v411
    %v431 = vpack.c.bf16 %v414, %v413
    %v432 = vpack.c.bf16 %v416, %v415
    %v433 = vld [vmem:[%s3] sm:$0xf]
    %v434 = vld [vmem:[%s3 + $0x4] sm:$0xf]
    %v435 = vld [vmem:[%s3 + $0x8] sm:$0xf]
    %v436 = vld [vmem:[%s3 + $0xc] sm:$0xf]
    %v437 = vld [vmem:[%s3 + $0x10] sm:$0xf]
    %v438 = vld [vmem:[%s3 + $0x14] sm:$0xf]
    %v439 = vld [vmem:[%s3 + $0x18] sm:$0xf]
    %v440 = vld [vmem:[%s3 + $0x1c] sm:$0xf]
    %v441 = vld [vmem:[%s3 + $0x20] sm:$0xf]
    %v442 = vld [vmem:[%s3 + $0x24] sm:$0xf]
    %v443 = vld [vmem:[%s3 + $0x28] sm:$0xf]
    %v444 = vld [vmem:[%s3 + $0x2c] sm:$0xf]
    %v445 = vld [vmem:[%s3 + $0x30] sm:$0xf]
    %v446 = vld [vmem:[%s3 + $0x34] sm:$0xf]
    %v447 = vld [vmem:[%s3 + $0x38] sm:$0xf]
    %v448 = vld [vmem:[%s3 + $0x3c] sm:$0xf]
    %v449 = vld [vmem:[%s4] sm:$0x1]
    %v451 = vlaneseq
    %v452 = vshrl.u32 %v451, 7
    %v453 = vsub.s32 0, %v452
    %v454 = vrot.slane %v449, %v453
    %v472 = vunpack.c.l.b16 %v433
    %v473 = vunpack.c.l.b16 %v434
    %v474 = vunpack.c.l.b16 %v435
    %v475 = vunpack.c.l.b16 %v436
    %v476 = vunpack.c.l.b16 %v437
    %v477 = vunpack.c.l.b16 %v438
    %v478 = vunpack.c.l.b16 %v439
    %v479 = vunpack.c.l.b16 %v440
    %v480 = vunpack.c.l.b16 %v441
    %v481 = vunpack.c.l.b16 %v442
    %v482 = vunpack.c.l.b16 %v443
    %v483 = vunpack.c.l.b16 %v444
    %v484 = vunpack.c.l.b16 %v445
    %v485 = vunpack.c.l.b16 %v446
    %v486 = vunpack.c.l.b16 %v447
    %v487 = vunpack.c.l.b16 %v448
    %v488 = vpack.c.b16 %v473, %v472
    %v489 = vpack.c.b16 %v475, %v474
    %v490 = vpack.c.b16 %v477, %v476
    %v491 = vpack.c.b16 %v479, %v478
    %v492 = vpack.c.b16 %v481, %v480
    %v493 = vpack.c.b16 %v483, %v482
    %v494 = vpack.c.b16 %v485, %v484
    %v495 = vpack.c.b16 %v487, %v486
    %504 = vmatprep.subr.bf16.mxu0 0
    %505 = vmatpush1.bf16.msra.mxu0 %v495
    %506 = vmatprep.subr.bf16.mxu0 0
    %507 = vmatpush1.bf16.msra.mxu0 %v494
    %508 = vmatprep.subr.bf16.mxu0 0
    %509 = vmatpush1.bf16.msra.mxu0 %v493
    %510 = vmatprep.subr.bf16.mxu0 0
    %511 = vmatpush1.bf16.msra.mxu0 %v492
    %512 = vmatprep.subr.bf16.mxu0 0
    %513 = vmatpush1.bf16.msra.mxu0 %v491
    %514 = vmatprep.subr.bf16.mxu0 0
    %515 = vmatpush1.bf16.msra.mxu0 %v490
    %516 = vmatprep.subr.bf16.mxu0 0
    %517 = vmatpush1.bf16.msra.mxu0 %v489
    %518 = vmatprep.subr.bf16.mxu0 0
    %519 = vmatpush1.bf16.msra.mxu0 %v488
    %520 = vmatprep.subr.bf16.mxu0 0
    %521 = vmatpush2.bf16.msra.mxu0 0
    %522 = vmatprep.subr.bf16.mxu0 0
    %523 = vmatpush2.bf16.msra.mxu0 0
    %524 = vmatprep.subr.bf16.mxu0 0
    %525 = vmatpush2.bf16.msra.mxu0 0
    %526 = vmatprep.subr.bf16.mxu0 0
    %527 = vmatpush2.bf16.msra.mxu0 0
    %528 = vmatprep.subr.bf16.mxu0 0
    %529 = vmatpush2.bf16.msra.mxu0 0
    %530 = vmatprep.subr.bf16.mxu0 0
    %531 = vmatpush2.bf16.msra.mxu0 0
    %532 = vmatprep.subr.bf16.mxu0 0
    %533 = vmatpush2.bf16.msra.mxu0 0
    %534 = vmatprep.subr.bf16.mxu0 0
    %535 = vmatpush2.bf16.msra.mxu0 0
    %536 = vmatprep.mubr.bf16.mxu0 0
    %537 = vmatmul.mubr.bf16.gmra.mxu0 %v417
    %v538 = vpop.f32.mrf.mxu0
    %v539 = vadd.f32 %v454, %v538
    %v540 = vpop.f32.mrf.mxu0
    %v541 = vpop.f32.mrf.mxu0
    %v542 = vadd.f32 %v454, %v541
    %v543 = vpop.f32.mrf.mxu0
    %544 = vmatprep.mubr.bf16.mxu0 0
    %545 = vmatmul.mubr.bf16.gmra.mxu0 %v418
    %v546 = vpop.f32.mrf.mxu0
    %v547 = vadd.f32 %v454, %v546
    %v548 = vpop.f32.mrf.mxu0
    %v549 = vpop.f32.mrf.mxu0
    %v550 = vadd.f32 %v454, %v549
    %v551 = vpop.f32.mrf.mxu0
    %552 = vmatprep.mubr.bf16.mxu0 0
    %553 = vmatmul.mubr.bf16.gmra.mxu0 %v419
    %v554 = vpop.f32.mrf.mxu0
    %v555 = vadd.f32 %v454, %v554
    %v556 = vpop.f32.mrf.mxu0
    %v557 = vpop.f32.mrf.mxu0
    %v558 = vadd.f32 %v454, %v557
    %v559 = vpop.f32.mrf.mxu0
    %560 = vmatprep.mubr.bf16.mxu0 0
    %561 = vmatmul.mubr.bf16.gmra.mxu0 %v420
    %v562 = vpop.f32.mrf.mxu0
    %v563 = vadd.f32 %v454, %v562
    %v564 = vpop.f32.mrf.mxu0
    %v565 = vpop.f32.mrf.mxu0
    %v566 = vadd.f32 %v454, %v565
    %v567 = vpop.f32.mrf.mxu0
    %568 = vmatprep.mubr.bf16.mxu0 0
    %569 = vmatmul.mubr.bf16.gmra.mxu0 %v421
    %v570 = vpop.f32.mrf.mxu0
    %v571 = vadd.f32 %v454, %v570
    %v572 = vpop.f32.mrf.mxu0
    %v573 = vpop.f32.mrf.mxu0
    %v574 = vadd.f32 %v454, %v573
    %v575 = vpop.f32.mrf.mxu0
    %576 = vmatprep.mubr.bf16.mxu0 0
    %577 = vmatmul.mubr.bf16.gmra.mxu0 %v422
    %v578 = vpop.f32.mrf.mxu0
    %v579 = vadd.f32 %v454, %v578
    %v580 = vpop.f32.mrf.mxu0
    %v581 = vpop.f32.mrf.mxu0
    %v582 = vadd.f32 %v454, %v581
    %v583 = vpop.f32.mrf.mxu0
    %584 = vmatprep.mubr.bf16.mxu0 0
    %585 = vmatmul.mubr.bf16.gmra.mxu0 %v423
    %v586 = vpop.f32.mrf.mxu0
    %v587 = vadd.f32 %v454, %v586
    %v588 = vpop.f32.mrf.mxu0
    %v589 = vpop.f32.mrf.mxu0
    %v590 = vadd.f32 %v454, %v589
    %v591 = vpop.f32.mrf.mxu0
    %592 = vmatprep.mubr.bf16.mxu0 0
    %593 = vmatmul.mubr.bf16.gmra.mxu0 %v424
    %v594 = vpop.f32.mrf.mxu0
    %v595 = vadd.f32 %v454, %v594
    %v596 = vpop.f32.mrf.mxu0
    %v597 = vpop.f32.mrf.mxu0
    %v598 = vadd.f32 %v454, %v597
    %v599 = vpop.f32.mrf.mxu0
    %600 = vmatprep.mubr.bf16.mxu0 0
    %601 = vmatmul.mubr.bf16.gmra.mxu0 %v425
    %v602 = vpop.f32.mrf.mxu0
    %v603 = vadd.f32 %v454, %v602
    %v604 = vpop.f32.mrf.mxu0
    %v605 = vpop.f32.mrf.mxu0
    %v606 = vadd.f32 %v454, %v605
    %v607 = vpop.f32.mrf.mxu0
    %608 = vmatprep.mubr.bf16.mxu0 0
    %609 = vmatmul.mubr.bf16.gmra.mxu0 %v426
    %v610 = vpop.f32.mrf.mxu0
    %v611 = vadd.f32 %v454, %v610
    %v612 = vpop.f32.mrf.mxu0
    %v613 = vpop.f32.mrf.mxu0
    %v614 = vadd.f32 %v454, %v613
    %v615 = vpop.f32.mrf.mxu0
    %616 = vmatprep.mubr.bf16.mxu0 0
    %617 = vmatmul.mubr.bf16.gmra.mxu0 %v427
    %v618 = vpop.f32.mrf.mxu0
    %v619 = vadd.f32 %v454, %v618
    %v620 = vpop.f32.mrf.mxu0
    %v621 = vpop.f32.mrf.mxu0
    %v622 = vadd.f32 %v454, %v621
    %v623 = vpop.f32.mrf.mxu0
    %624 = vmatprep.mubr.bf16.mxu0 0
    %625 = vmatmul.mubr.bf16.gmra.mxu0 %v428
    %v626 = vpop.f32.mrf.mxu0
    %v627 = vadd.f32 %v454, %v626
    %v628 = vpop.f32.mrf.mxu0
    %v629 = vpop.f32.mrf.mxu0
    %v630 = vadd.f32 %v454, %v629
    %v631 = vpop.f32.mrf.mxu0
    %632 = vmatprep.mubr.bf16.mxu0 0
    %633 = vmatmul.mubr.bf16.gmra.mxu0 %v429
    %v634 = vpop.f32.mrf.mxu0
    %v635 = vadd.f32 %v454, %v634
    %v636 = vpop.f32.mrf.mxu0
    %v637 = vpop.f32.mrf.mxu0
    %v638 = vadd.f32 %v454, %v637
    %v639 = vpop.f32.mrf.mxu0
    %640 = vmatprep.mubr.bf16.mxu0 0
    %641 = vmatmul.mubr.bf16.gmra.mxu0 %v430
    %v642 = vpop.f32.mrf.mxu0
    %v643 = vadd.f32 %v454, %v642
    %v644 = vpop.f32.mrf.mxu0
    %v645 = vpop.f32.mrf.mxu0
    %v646 = vadd.f32 %v454, %v645
    %v647 = vpop.f32.mrf.mxu0
    %648 = vmatprep.mubr.bf16.mxu0 0
    %649 = vmatmul.mubr.bf16.gmra.mxu0 %v431
    %v650 = vpop.f32.mrf.mxu0
    %v651 = vadd.f32 %v454, %v650
    %v652 = vpop.f32.mrf.mxu0
    %v653 = vpop.f32.mrf.mxu0
    %v654 = vadd.f32 %v454, %v653
    %v655 = vpop.f32.mrf.mxu0
    %656 = vmatprep.mubr.bf16.mxu0 0
    %657 = vmatmul.mubr.bf16.gmra.mxu0 %v432
    %v658 = vpop.f32.mrf.mxu0
    %v659 = vadd.f32 %v454, %v658
    %v660 = vpop.f32.mrf.mxu0
    %v661 = vpop.f32.mrf.mxu0
    %v662 = vadd.f32 %v454, %v661
    %v663 = vpop.f32.mrf.mxu0
    %664 = vdwg.mxu0
    %v665 = vmax.f32 %v539, 0.0
    %v666 = vmax.f32 %v542, 0.0
    %v667 = vmax.f32 %v547, 0.0
    %v668 = vmax.f32 %v550, 0.0
    %v669 = vmax.f32 %v555, 0.0
    %v670 = vmax.f32 %v558, 0.0
    %v671 = vmax.f32 %v563, 0.0
    %v672 = vmax.f32 %v566, 0.0
    %v673 = vmax.f32 %v571, 0.0
    %v674 = vmax.f32 %v574, 0.0
    %v675 = vmax.f32 %v579, 0.0
    %v676 = vmax.f32 %v582, 0.0
    %v677 = vmax.f32 %v587, 0.0
    %v678 = vmax.f32 %v590, 0.0
    %v679 = vmax.f32 %v595, 0.0
    %v680 = vmax.f32 %v598, 0.0
    %v681 = vmax.f32 %v603, 0.0
    %v682 = vmax.f32 %v606, 0.0
    %v683 = vmax.f32 %v611, 0.0
    %v684 = vmax.f32 %v614, 0.0
    %v685 = vmax.f32 %v619, 0.0
    %v686 = vmax.f32 %v622, 0.0
    %v687 = vmax.f32 %v627, 0.0
    %v688 = vmax.f32 %v630, 0.0
    %v689 = vmax.f32 %v635, 0.0
    %v690 = vmax.f32 %v638, 0.0
    %v691 = vmax.f32 %v643, 0.0
    %v692 = vmax.f32 %v646, 0.0
    %v693 = vmax.f32 %v651, 0.0
    %v694 = vmax.f32 %v654, 0.0
    %v695 = vmax.f32 %v659, 0.0
    %v696 = vmax.f32 %v662, 0.0
    %v697 = vpack.c.bf16 %v666, %v665
    %v698 = vpack.c.bf16 %v668, %v667
    %v699 = vpack.c.bf16 %v670, %v669
    %v700 = vpack.c.bf16 %v672, %v671
    %v701 = vpack.c.bf16 %v674, %v673
    %v702 = vpack.c.bf16 %v676, %v675
    %v703 = vpack.c.bf16 %v678, %v677
    %v704 = vpack.c.bf16 %v680, %v679
    %v705 = vpack.c.bf16 %v682, %v681
    %v706 = vpack.c.bf16 %v684, %v683
    %v707 = vpack.c.bf16 %v686, %v685
    %v708 = vpack.c.bf16 %v688, %v687
    %v709 = vpack.c.bf16 %v690, %v689
    %v710 = vpack.c.bf16 %v692, %v691
    %v711 = vpack.c.bf16 %v694, %v693
    %v712 = vpack.c.bf16 %v696, %v695
    %v713 = vld [vmem:[%s5] sm:$0xf]
    %v714 = vld [vmem:[%s5 + $0x4] sm:$0xf]
    %v715 = vld [vmem:[%s5 + $0x8] sm:$0xf]
    %v716 = vld [vmem:[%s5 + $0xc] sm:$0xf]
    %v717 = vld [vmem:[%s5 + $0x10] sm:$0xf]
    %v718 = vld [vmem:[%s5 + $0x14] sm:$0xf]
    %v719 = vld [vmem:[%s5 + $0x18] sm:$0xf]
    %v720 = vld [vmem:[%s5 + $0x1c] sm:$0xf]
    %v721 = vld [vmem:[%s5 + $0x20] sm:$0xf]
    %v722 = vld [vmem:[%s5 + $0x24] sm:$0xf]
    %v723 = vld [vmem:[%s5 + $0x28] sm:$0xf]
    %v724 = vld [vmem:[%s5 + $0x2c] sm:$0xf]
    %v725 = vld [vmem:[%s5 + $0x30] sm:$0xf]
    %v726 = vld [vmem:[%s5 + $0x34] sm:$0xf]
    %v727 = vld [vmem:[%s5 + $0x38] sm:$0xf]
    %v728 = vld [vmem:[%s5 + $0x3c] sm:$0xf]
    %v729 = vld [vmem:[%s6] sm:$0x1]
    %v731 = vlaneseq
    %v732 = vshrl.u32 %v731, 7
    %v733 = vsub.s32 0, %v732
    %v734 = vrot.slane %v729, %v733
    %v752 = vunpack.c.l.b16 %v713
    %v753 = vunpack.c.l.b16 %v714
    %v754 = vunpack.c.l.b16 %v715
    %v755 = vunpack.c.l.b16 %v716
    %v756 = vunpack.c.l.b16 %v717
    %v757 = vunpack.c.l.b16 %v718
    %v758 = vunpack.c.l.b16 %v719
    %v759 = vunpack.c.l.b16 %v720
    %v760 = vunpack.c.l.b16 %v721
    %v761 = vunpack.c.l.b16 %v722
    %v762 = vunpack.c.l.b16 %v723
    %v763 = vunpack.c.l.b16 %v724
    %v764 = vunpack.c.l.b16 %v725
    %v765 = vunpack.c.l.b16 %v726
    %v766 = vunpack.c.l.b16 %v727
    %v767 = vunpack.c.l.b16 %v728
    %v768 = vpack.c.b16 %v753, %v752
    %v769 = vpack.c.b16 %v755, %v754
    %v770 = vpack.c.b16 %v757, %v756
    %v771 = vpack.c.b16 %v759, %v758
    %v772 = vpack.c.b16 %v761, %v760
    %v773 = vpack.c.b16 %v763, %v762
    %v774 = vpack.c.b16 %v765, %v764
    %v775 = vpack.c.b16 %v767, %v766
    %784 = vmatprep.subr.bf16.mxu0 0
    %785 = vmatpush1.bf16.msra.mxu0 %v775
    %786 = vmatprep.subr.bf16.mxu0 0
    %787 = vmatpush1.bf16.msra.mxu0 %v774
    %788 = vmatprep.subr.bf16.mxu0 0
    %789 = vmatpush1.bf16.msra.mxu0 %v773
    %790 = vmatprep.subr.bf16.mxu0 0
    %791 = vmatpush1.bf16.msra.mxu0 %v772
    %792 = vmatprep.subr.bf16.mxu0 0
    %793 = vmatpush1.bf16.msra.mxu0 %v771
    %794 = vmatprep.subr.bf16.mxu0 0
    %795 = vmatpush1.bf16.msra.mxu0 %v770
    %796 = vmatprep.subr.bf16.mxu0 0
    %797 = vmatpush1.bf16.msra.mxu0 %v769
    %798 = vmatprep.subr.bf16.mxu0 0
    %799 = vmatpush1.bf16.msra.mxu0 %v768
    %800 = vmatprep.subr.bf16.mxu0 0
    %801 = vmatpush2.bf16.msra.mxu0 0
    %802 = vmatprep.subr.bf16.mxu0 0
    %803 = vmatpush2.bf16.msra.mxu0 0
    %804 = vmatprep.subr.bf16.mxu0 0
    %805 = vmatpush2.bf16.msra.mxu0 0
    %806 = vmatprep.subr.bf16.mxu0 0
    %807 = vmatpush2.bf16.msra.mxu0 0
    %808 = vmatprep.subr.bf16.mxu0 0
    %809 = vmatpush2.bf16.msra.mxu0 0
    %810 = vmatprep.subr.bf16.mxu0 0
    %811 = vmatpush2.bf16.msra.mxu0 0
    %812 = vmatprep.subr.bf16.mxu0 0
    %813 = vmatpush2.bf16.msra.mxu0 0
    %814 = vmatprep.subr.bf16.mxu0 0
    %815 = vmatpush2.bf16.msra.mxu0 0
    %816 = vmatprep.mubr.bf16.mxu0 0
    %817 = vmatmul.mubr.bf16.gmra.mxu0 %v697
    %v818 = vpop.f32.mrf.mxu0
    %v819 = vadd.f32 %v734, %v818
    %v820 = vpop.f32.mrf.mxu0
    %v821 = vpop.f32.mrf.mxu0
    %v822 = vadd.f32 %v734, %v821
    %v823 = vpop.f32.mrf.mxu0
    %824 = vmatprep.mubr.bf16.mxu0 0
    %825 = vmatmul.mubr.bf16.gmra.mxu0 %v698
    %v826 = vpop.f32.mrf.mxu0
    %v827 = vadd.f32 %v734, %v826
    %v828 = vpop.f32.mrf.mxu0
    %v829 = vpop.f32.mrf.mxu0
    %v830 = vadd.f32 %v734, %v829
    %v831 = vpop.f32.mrf.mxu0
    %832 = vmatprep.mubr.bf16.mxu0 0
    %833 = vmatmul.mubr.bf16.gmra.mxu0 %v699
    %v834 = vpop.f32.mrf.mxu0
    %v835 = vadd.f32 %v734, %v834
    %v836 = vpop.f32.mrf.mxu0
    %v837 = vpop.f32.mrf.mxu0
    %v838 = vadd.f32 %v734, %v837
    %v839 = vpop.f32.mrf.mxu0
    %840 = vmatprep.mubr.bf16.mxu0 0
    %841 = vmatmul.mubr.bf16.gmra.mxu0 %v700
    %v842 = vpop.f32.mrf.mxu0
    %v843 = vadd.f32 %v734, %v842
    %v844 = vpop.f32.mrf.mxu0
    %v845 = vpop.f32.mrf.mxu0
    %v846 = vadd.f32 %v734, %v845
    %v847 = vpop.f32.mrf.mxu0
    %848 = vmatprep.mubr.bf16.mxu0 0
    %849 = vmatmul.mubr.bf16.gmra.mxu0 %v701
    %v850 = vpop.f32.mrf.mxu0
    %v851 = vadd.f32 %v734, %v850
    %v852 = vpop.f32.mrf.mxu0
    %v853 = vpop.f32.mrf.mxu0
    %v854 = vadd.f32 %v734, %v853
    %v855 = vpop.f32.mrf.mxu0
    %856 = vmatprep.mubr.bf16.mxu0 0
    %857 = vmatmul.mubr.bf16.gmra.mxu0 %v702
    %v858 = vpop.f32.mrf.mxu0
    %v859 = vadd.f32 %v734, %v858
    %v860 = vpop.f32.mrf.mxu0
    %v861 = vpop.f32.mrf.mxu0
    %v862 = vadd.f32 %v734, %v861
    %v863 = vpop.f32.mrf.mxu0
    %864 = vmatprep.mubr.bf16.mxu0 0
    %865 = vmatmul.mubr.bf16.gmra.mxu0 %v703
    %v866 = vpop.f32.mrf.mxu0
    %v867 = vadd.f32 %v734, %v866
    %v868 = vpop.f32.mrf.mxu0
    %v869 = vpop.f32.mrf.mxu0
    %v870 = vadd.f32 %v734, %v869
    %v871 = vpop.f32.mrf.mxu0
    %872 = vmatprep.mubr.bf16.mxu0 0
    %873 = vmatmul.mubr.bf16.gmra.mxu0 %v704
    %v874 = vpop.f32.mrf.mxu0
    %v875 = vadd.f32 %v734, %v874
    %v876 = vpop.f32.mrf.mxu0
    %v877 = vpop.f32.mrf.mxu0
    %v878 = vadd.f32 %v734, %v877
    %v879 = vpop.f32.mrf.mxu0
    %880 = vmatprep.mubr.bf16.mxu0 0
    %881 = vmatmul.mubr.bf16.gmra.mxu0 %v705
    %v882 = vpop.f32.mrf.mxu0
    %v883 = vadd.f32 %v734, %v882
    %v884 = vpop.f32.mrf.mxu0
    %v885 = vpop.f32.mrf.mxu0
    %v886 = vadd.f32 %v734, %v885
    %v887 = vpop.f32.mrf.mxu0
    %888 = vmatprep.mubr.bf16.mxu0 0
    %889 = vmatmul.mubr.bf16.gmra.mxu0 %v706
    %v890 = vpop.f32.mrf.mxu0
    %v891 = vadd.f32 %v734, %v890
    %v892 = vpop.f32.mrf.mxu0
    %v893 = vpop.f32.mrf.mxu0
    %v894 = vadd.f32 %v734, %v893
    %v895 = vpop.f32.mrf.mxu0
    %896 = vmatprep.mubr.bf16.mxu0 0
    %897 = vmatmul.mubr.bf16.gmra.mxu0 %v707
    %v898 = vpop.f32.mrf.mxu0
    %v899 = vadd.f32 %v734, %v898
    %v900 = vpop.f32.mrf.mxu0
    %v901 = vpop.f32.mrf.mxu0
    %v902 = vadd.f32 %v734, %v901
    %v903 = vpop.f32.mrf.mxu0
    %904 = vmatprep.mubr.bf16.mxu0 0
    %905 = vmatmul.mubr.bf16.gmra.mxu0 %v708
    %v906 = vpop.f32.mrf.mxu0
    %v907 = vadd.f32 %v734, %v906
    %v908 = vpop.f32.mrf.mxu0
    %v909 = vpop.f32.mrf.mxu0
    %v910 = vadd.f32 %v734, %v909
    %v911 = vpop.f32.mrf.mxu0
    %912 = vmatprep.mubr.bf16.mxu0 0
    %913 = vmatmul.mubr.bf16.gmra.mxu0 %v709
    %v914 = vpop.f32.mrf.mxu0
    %v915 = vadd.f32 %v734, %v914
    %v916 = vpop.f32.mrf.mxu0
    %v917 = vpop.f32.mrf.mxu0
    %v918 = vadd.f32 %v734, %v917
    %v919 = vpop.f32.mrf.mxu0
    %920 = vmatprep.mubr.bf16.mxu0 0
    %921 = vmatmul.mubr.bf16.gmra.mxu0 %v710
    %v922 = vpop.f32.mrf.mxu0
    %v923 = vadd.f32 %v734, %v922
    %v924 = vpop.f32.mrf.mxu0
    %v925 = vpop.f32.mrf.mxu0
    %v926 = vadd.f32 %v734, %v925
    %v927 = vpop.f32.mrf.mxu0
    %928 = vmatprep.mubr.bf16.mxu0 0
    %929 = vmatmul.mubr.bf16.gmra.mxu0 %v711
    %v930 = vpop.f32.mrf.mxu0
    %v931 = vadd.f32 %v734, %v930
    %v932 = vpop.f32.mrf.mxu0
    %v933 = vpop.f32.mrf.mxu0
    %v934 = vadd.f32 %v734, %v933
    %v935 = vpop.f32.mrf.mxu0
    %936 = vmatprep.mubr.bf16.mxu0 0
    %937 = vmatmul.mubr.bf16.gmra.mxu0 %v712
    %v938 = vpop.f32.mrf.mxu0
    %v939 = vadd.f32 %v734, %v938
    %v940 = vpop.f32.mrf.mxu0
    %v941 = vpop.f32.mrf.mxu0
    %v942 = vadd.f32 %v734, %v941
    %v943 = vpop.f32.mrf.mxu0
    %944 = vdwg.mxu0
    %v945 = vmax.f32 %v819, 0.0
    %v946 = vmax.f32 %v822, 0.0
    %v947 = vmax.f32 %v827, 0.0
    %v948 = vmax.f32 %v830, 0.0
    %v949 = vmax.f32 %v835, 0.0
    %v950 = vmax.f32 %v838, 0.0
    %v951 = vmax.f32 %v843, 0.0
    %v952 = vmax.f32 %v846, 0.0
    %v953 = vmax.f32 %v851, 0.0
    %v954 = vmax.f32 %v854, 0.0
    %v955 = vmax.f32 %v859, 0.0
    %v956 = vmax.f32 %v862, 0.0
    %v957 = vmax.f32 %v867, 0.0
    %v958 = vmax.f32 %v870, 0.0
    %v959 = vmax.f32 %v875, 0.0
    %v960 = vmax.f32 %v878, 0.0
    %v961 = vmax.f32 %v883, 0.0
    %v962 = vmax.f32 %v886, 0.0
    %v963 = vmax.f32 %v891, 0.0
    %v964 = vmax.f32 %v894, 0.0
    %v965 = vmax.f32 %v899, 0.0
    %v966 = vmax.f32 %v902, 0.0
    %v967 = vmax.f32 %v907, 0.0
    %v968 = vmax.f32 %v910, 0.0
    %v969 = vmax.f32 %v915, 0.0
    %v970 = vmax.f32 %v918, 0.0
    %v971 = vmax.f32 %v923, 0.0
    %v972 = vmax.f32 %v926, 0.0
    %v973 = vmax.f32 %v931, 0.0
    %v974 = vmax.f32 %v934, 0.0
    %v975 = vmax.f32 %v939, 0.0
    %v976 = vmax.f32 %v942, 0.0
    %v977 = vpack.c.bf16 %v946, %v945
    %v978 = vpack.c.bf16 %v948, %v947
    %v979 = vpack.c.bf16 %v950, %v949
    %v980 = vpack.c.bf16 %v952, %v951
    %v981 = vpack.c.bf16 %v954, %v953
    %v982 = vpack.c.bf16 %v956, %v955
    %v983 = vpack.c.bf16 %v958, %v957
    %v984 = vpack.c.bf16 %v960, %v959
    %v985 = vpack.c.bf16 %v962, %v961
    %v986 = vpack.c.bf16 %v964, %v963
    %v987 = vpack.c.bf16 %v966, %v965
    %v988 = vpack.c.bf16 %v968, %v967
    %v989 = vpack.c.bf16 %v970, %v969
    %v990 = vpack.c.bf16 %v972, %v971
    %v991 = vpack.c.bf16 %v974, %v973
    %v992 = vpack.c.bf16 %v976, %v975
    %v993 = vld [vmem:[#allocation2] sm:$0xf]
    %v994 = vld [vmem:[#allocation2 + $0x4] sm:$0xf]
    %v995 = vld [vmem:[#allocation2 + $0x8] sm:$0xf]
    %v996 = vld [vmem:[#allocation2 + $0xc] sm:$0xf]
    %v997 = vld [vmem:[#allocation2 + $0x10] sm:$0xf]
    %v998 = vld [vmem:[#allocation2 + $0x14] sm:$0xf]
    %v999 = vld [vmem:[#allocation2 + $0x18] sm:$0xf]
    %v1000 = vld [vmem:[#allocation2 + $0x1c] sm:$0xf]
    %v1001 = vld [vmem:[#allocation2 + $0x20] sm:$0xf]
    %v1002 = vld [vmem:[#allocation2 + $0x24] sm:$0xf]
    %v1003 = vld [vmem:[#allocation2 + $0x28] sm:$0xf]
    %v1004 = vld [vmem:[#allocation2 + $0x2c] sm:$0xf]
    %v1005 = vld [vmem:[#allocation2 + $0x30] sm:$0xf]
    %v1006 = vld [vmem:[#allocation2 + $0x34] sm:$0xf]
    %v1007 = vld [vmem:[#allocation2 + $0x38] sm:$0xf]
    %v1008 = vld [vmem:[#allocation2 + $0x3c] sm:$0xf]
    %v1009 = vld [vmem:[%s8] sm:$0x1]
    %v1011 = vlaneseq
    %v1012 = vshrl.u32 %v1011, 7
    %v1013 = vsub.s32 0, %v1012
    %v1014 = vrot.slane %v1009, %v1013
    %v1032 = vunpack.c.l.b16 %v993
    %v1033 = vunpack.c.l.b16 %v994
    %v1034 = vunpack.c.l.b16 %v995
    %v1035 = vunpack.c.l.b16 %v996
    %v1036 = vunpack.c.l.b16 %v997
    %v1037 = vunpack.c.l.b16 %v998
    %v1038 = vunpack.c.l.b16 %v999
    %v1039 = vunpack.c.l.b16 %v1000
    %v1040 = vunpack.c.l.b16 %v1001
    %v1041 = vunpack.c.l.b16 %v1002
    %v1042 = vunpack.c.l.b16 %v1003
    %v1043 = vunpack.c.l.b16 %v1004
    %v1044 = vunpack.c.l.b16 %v1005
    %v1045 = vunpack.c.l.b16 %v1006
    %v1046 = vunpack.c.l.b16 %v1007
    %v1047 = vunpack.c.l.b16 %v1008
    %v1048 = vpack.c.b16 %v1033, %v1032
    %v1049 = vpack.c.b16 %v1035, %v1034
    %v1050 = vpack.c.b16 %v1037, %v1036
    %v1051 = vpack.c.b16 %v1039, %v1038
    %v1052 = vpack.c.b16 %v1041, %v1040
    %v1053 = vpack.c.b16 %v1043, %v1042
    %v1054 = vpack.c.b16 %v1045, %v1044
    %v1055 = vpack.c.b16 %v1047, %v1046
    %1064 = vmatprep.subr.bf16.mxu0 0
    %1065 = vmatpush1.bf16.msra.mxu0 %v1055
    %1066 = vmatprep.subr.bf16.mxu0 0
    %1067 = vmatpush1.bf16.msra.mxu0 %v1054
    %1068 = vmatprep.subr.bf16.mxu0 0
    %1069 = vmatpush1.bf16.msra.mxu0 %v1053
    %1070 = vmatprep.subr.bf16.mxu0 0
    %1071 = vmatpush1.bf16.msra.mxu0 %v1052
    %1072 = vmatprep.subr.bf16.mxu0 0
    %1073 = vmatpush1.bf16.msra.mxu0 %v1051
    %1074 = vmatprep.subr.bf16.mxu0 0
    %1075 = vmatpush1.bf16.msra.mxu0 %v1050
    %1076 = vmatprep.subr.bf16.mxu0 0
    %1077 = vmatpush1.bf16.msra.mxu0 %v1049
    %1078 = vmatprep.subr.bf16.mxu0 0
    %1079 = vmatpush1.bf16.msra.mxu0 %v1048
    %1080 = vmatprep.subr.bf16.mxu0 0
    %1081 = vmatpush2.bf16.msra.mxu0 0
    %1082 = vmatprep.subr.bf16.mxu0 0
    %1083 = vmatpush2.bf16.msra.mxu0 0
    %1084 = vmatprep.subr.bf16.mxu0 0
    %1085 = vmatpush2.bf16.msra.mxu0 0
    %1086 = vmatprep.subr.bf16.mxu0 0
    %1087 = vmatpush2.bf16.msra.mxu0 0
    %1088 = vmatprep.subr.bf16.mxu0 0
    %1089 = vmatpush2.bf16.msra.mxu0 0
    %1090 = vmatprep.subr.bf16.mxu0 0
    %1091 = vmatpush2.bf16.msra.mxu0 0
    %1092 = vmatprep.subr.bf16.mxu0 0
    %1093 = vmatpush2.bf16.msra.mxu0 0
    %1094 = vmatprep.subr.bf16.mxu0 0
    %1095 = vmatpush2.bf16.msra.mxu0 0
    %1096 = vmatprep.mubr.bf16.mxu0 0
    %1097 = vmatmul.mubr.bf16.gmra.mxu0 %v977
    %v1098 = vpop.f32.mrf.mxu0
    %v1099 = vadd.f32 %v1014, %v1098
    %v1100 = vpop.f32.mrf.mxu0
    %v1101 = vpop.f32.mrf.mxu0
    %v1102 = vadd.f32 %v1014, %v1101
    %v1103 = vpop.f32.mrf.mxu0
    %1104 = vmatprep.mubr.bf16.mxu0 0
    %1105 = vmatmul.mubr.bf16.gmra.mxu0 %v978
    %v1106 = vpop.f32.mrf.mxu0
    %v1107 = vadd.f32 %v1014, %v1106
    %v1108 = vpop.f32.mrf.mxu0
    %v1109 = vpop.f32.mrf.mxu0
    %v1110 = vadd.f32 %v1014, %v1109
    %v1111 = vpop.f32.mrf.mxu0
    %1112 = vmatprep.mubr.bf16.mxu0 0
    %1113 = vmatmul.mubr.bf16.gmra.mxu0 %v979
    %v1114 = vpop.f32.mrf.mxu0
    %v1115 = vadd.f32 %v1014, %v1114
    %v1116 = vpop.f32.mrf.mxu0
    %v1117 = vpop.f32.mrf.mxu0
    %v1118 = vadd.f32 %v1014, %v1117
    %v1119 = vpop.f32.mrf.mxu0
    %1120 = vmatprep.mubr.bf16.mxu0 0
    %1121 = vmatmul.mubr.bf16.gmra.mxu0 %v980
    %v1122 = vpop.f32.mrf.mxu0
    %v1123 = vadd.f32 %v1014, %v1122
    %v1124 = vpop.f32.mrf.mxu0
    %v1125 = vpop.f32.mrf.mxu0
    %v1126 = vadd.f32 %v1014, %v1125
    %v1127 = vpop.f32.mrf.mxu0
    %1128 = vmatprep.mubr.bf16.mxu0 0
    %1129 = vmatmul.mubr.bf16.gmra.mxu0 %v981
    %v1130 = vpop.f32.mrf.mxu0
    %v1131 = vadd.f32 %v1014, %v1130
    %v1132 = vpop.f32.mrf.mxu0
    %v1133 = vpop.f32.mrf.mxu0
    %v1134 = vadd.f32 %v1014, %v1133
    %v1135 = vpop.f32.mrf.mxu0
    %1136 = vmatprep.mubr.bf16.mxu0 0
    %1137 = vmatmul.mubr.bf16.gmra.mxu0 %v982
    %v1138 = vpop.f32.mrf.mxu0
    %v1139 = vadd.f32 %v1014, %v1138
    %v1140 = vpop.f32.mrf.mxu0
    %v1141 = vpop.f32.mrf.mxu0
    %v1142 = vadd.f32 %v1014, %v1141
    %v1143 = vpop.f32.mrf.mxu0
    %1144 = vmatprep.mubr.bf16.mxu0 0
    %1145 = vmatmul.mubr.bf16.gmra.mxu0 %v983
    %v1146 = vpop.f32.mrf.mxu0
    %v1147 = vadd.f32 %v1014, %v1146
    %v1148 = vpop.f32.mrf.mxu0
    %v1149 = vpop.f32.mrf.mxu0
    %v1150 = vadd.f32 %v1014, %v1149
    %v1151 = vpop.f32.mrf.mxu0
    %1152 = vmatprep.mubr.bf16.mxu0 0
    %1153 = vmatmul.mubr.bf16.gmra.mxu0 %v984
    %v1154 = vpop.f32.mrf.mxu0
    %v1155 = vadd.f32 %v1014, %v1154
    %v1156 = vpop.f32.mrf.mxu0
    %v1157 = vpop.f32.mrf.mxu0
    %v1158 = vadd.f32 %v1014, %v1157
    %v1159 = vpop.f32.mrf.mxu0
    %1160 = vmatprep.mubr.bf16.mxu0 0
    %1161 = vmatmul.mubr.bf16.gmra.mxu0 %v985
    %v1162 = vpop.f32.mrf.mxu0
    %v1163 = vadd.f32 %v1014, %v1162
    %v1164 = vpop.f32.mrf.mxu0
    %v1165 = vpop.f32.mrf.mxu0
    %v1166 = vadd.f32 %v1014, %v1165
    %v1167 = vpop.f32.mrf.mxu0
    %1168 = vmatprep.mubr.bf16.mxu0 0
    %1169 = vmatmul.mubr.bf16.gmra.mxu0 %v986
    %v1170 = vpop.f32.mrf.mxu0
    %v1171 = vadd.f32 %v1014, %v1170
    %v1172 = vpop.f32.mrf.mxu0
    %v1173 = vpop.f32.mrf.mxu0
    %v1174 = vadd.f32 %v1014, %v1173
    %v1175 = vpop.f32.mrf.mxu0
    %1176 = vmatprep.mubr.bf16.mxu0 0
    %1177 = vmatmul.mubr.bf16.gmra.mxu0 %v987
    %v1178 = vpop.f32.mrf.mxu0
    %v1179 = vadd.f32 %v1014, %v1178
    %v1180 = vpop.f32.mrf.mxu0
    %v1181 = vpop.f32.mrf.mxu0
    %v1182 = vadd.f32 %v1014, %v1181
    %v1183 = vpop.f32.mrf.mxu0
    %1184 = vmatprep.mubr.bf16.mxu0 0
    %1185 = vmatmul.mubr.bf16.gmra.mxu0 %v988
    %v1186 = vpop.f32.mrf.mxu0
    %v1187 = vadd.f32 %v1014, %v1186
    %v1188 = vpop.f32.mrf.mxu0
    %v1189 = vpop.f32.mrf.mxu0
    %v1190 = vadd.f32 %v1014, %v1189
    %v1191 = vpop.f32.mrf.mxu0
    %1192 = vmatprep.mubr.bf16.mxu0 0
    %1193 = vmatmul.mubr.bf16.gmra.mxu0 %v989
    %v1194 = vpop.f32.mrf.mxu0
    %v1195 = vadd.f32 %v1014, %v1194
    %v1196 = vpop.f32.mrf.mxu0
    %v1197 = vpop.f32.mrf.mxu0
    %v1198 = vadd.f32 %v1014, %v1197
    %v1199 = vpop.f32.mrf.mxu0
    %1200 = vmatprep.mubr.bf16.mxu0 0
    %1201 = vmatmul.mubr.bf16.gmra.mxu0 %v990
    %v1202 = vpop.f32.mrf.mxu0
    %v1203 = vadd.f32 %v1014, %v1202
    %v1204 = vpop.f32.mrf.mxu0
    %v1205 = vpop.f32.mrf.mxu0
    %v1206 = vadd.f32 %v1014, %v1205
    %v1207 = vpop.f32.mrf.mxu0
    %1208 = vmatprep.mubr.bf16.mxu0 0
    %1209 = vmatmul.mubr.bf16.gmra.mxu0 %v991
    %v1210 = vpop.f32.mrf.mxu0
    %v1211 = vadd.f32 %v1014, %v1210
    %v1212 = vpop.f32.mrf.mxu0
    %v1213 = vpop.f32.mrf.mxu0
    %v1214 = vadd.f32 %v1014, %v1213
    %v1215 = vpop.f32.mrf.mxu0
    %1216 = vmatprep.mubr.bf16.mxu0 0
    %1217 = vmatmul.mubr.bf16.gmra.mxu0 %v992
    %v1218 = vpop.f32.mrf.mxu0
    %v1219 = vadd.f32 %v1014, %v1218
    %v1220 = vpop.f32.mrf.mxu0
    %v1221 = vpop.f32.mrf.mxu0
    %v1222 = vadd.f32 %v1014, %v1221
    %v1223 = vpop.f32.mrf.mxu0
    %1224 = vdwg.mxu0
    %v1225 = vpack.c.bf16 %v1102, %v1099
    %v1226 = vpack.c.bf16 %v1110, %v1107
    %v1227 = vpack.c.bf16 %v1118, %v1115
    %v1228 = vpack.c.bf16 %v1126, %v1123
    %v1229 = vpack.c.bf16 %v1134, %v1131
    %v1230 = vpack.c.bf16 %v1142, %v1139
    %v1231 = vpack.c.bf16 %v1150, %v1147
    %v1232 = vpack.c.bf16 %v1158, %v1155
    %v1233 = vpack.c.bf16 %v1166, %v1163
    %v1234 = vpack.c.bf16 %v1174, %v1171
    %v1235 = vpack.c.bf16 %v1182, %v1179
    %v1236 = vpack.c.bf16 %v1190, %v1187
    %v1237 = vpack.c.bf16 %v1198, %v1195
    %v1238 = vpack.c.bf16 %v1206, %v1203
    %v1239 = vpack.c.bf16 %v1214, %v1211
    %v1240 = vpack.c.bf16 %v1222, %v1219
    %v1257 = vunpack.c.l.b16 %v1225
    %v1258 = vunpack.c.h.b16 %v1225
    %v1259 = vunpack.c.l.b16 %v1226
    %v1260 = vunpack.c.h.b16 %v1226
    %v1261 = vunpack.c.l.b16 %v1227
    %v1262 = vunpack.c.h.b16 %v1227
    %v1263 = vunpack.c.l.b16 %v1228
    %v1264 = vunpack.c.h.b16 %v1228
    %v1265 = vunpack.c.l.b16 %v1229
    %v1266 = vunpack.c.h.b16 %v1229
    %v1267 = vunpack.c.l.b16 %v1230
    %v1268 = vunpack.c.h.b16 %v1230
    %v1269 = vunpack.c.l.b16 %v1231
    %v1270 = vunpack.c.h.b16 %v1231
    %v1271 = vunpack.c.l.b16 %v1232
    %v1272 = vunpack.c.h.b16 %v1232
    %v1273 = vunpack.c.l.b16 %v1233
    %v1274 = vunpack.c.h.b16 %v1233
    %v1275 = vunpack.c.l.b16 %v1234
    %v1276 = vunpack.c.h.b16 %v1234
    %v1277 = vunpack.c.l.b16 %v1235
    %v1278 = vunpack.c.h.b16 %v1235
    %v1279 = vunpack.c.l.b16 %v1236
    %v1280 = vunpack.c.h.b16 %v1236
    %v1281 = vunpack.c.l.b16 %v1237
    %v1282 = vunpack.c.h.b16 %v1237
    %v1283 = vunpack.c.l.b16 %v1238
    %v1284 = vunpack.c.h.b16 %v1238
    %v1285 = vunpack.c.l.b16 %v1239
    %v1286 = vunpack.c.h.b16 %v1239
    %v1287 = vunpack.c.l.b16 %v1240
    %v1288 = vunpack.c.h.b16 %v1240
    %v1289 = vpack.c.b16 %v1257, %v1257
    %v1290 = vpack.c.b16 %v1258, %v1258
    %v1291 = vpack.c.b16 %v1259, %v1259
    %v1292 = vpack.c.b16 %v1260, %v1260
    %v1293 = vpack.c.b16 %v1261, %v1261
    %v1294 = vpack.c.b16 %v1262, %v1262
    %v1295 = vpack.c.b16 %v1263, %v1263
    %v1296 = vpack.c.b16 %v1264, %v1264
    %v1297 = vpack.c.b16 %v1265, %v1265
    %v1298 = vpack.c.b16 %v1266, %v1266
    %v1299 = vpack.c.b16 %v1267, %v1267
    %v1300 = vpack.c.b16 %v1268, %v1268
    %v1301 = vpack.c.b16 %v1269, %v1269
    %v1302 = vpack.c.b16 %v1270, %v1270
    %v1303 = vpack.c.b16 %v1271, %v1271
    %v1304 = vpack.c.b16 %v1272, %v1272
    %v1305 = vpack.c.b16 %v1273, %v1273
    %v1306 = vpack.c.b16 %v1274, %v1274
    %v1307 = vpack.c.b16 %v1275, %v1275
    %v1308 = vpack.c.b16 %v1276, %v1276
    %v1309 = vpack.c.b16 %v1277, %v1277
    %v1310 = vpack.c.b16 %v1278, %v1278
    %v1311 = vpack.c.b16 %v1279, %v1279
    %v1312 = vpack.c.b16 %v1280, %v1280
    %v1313 = vpack.c.b16 %v1281, %v1281
    %v1314 = vpack.c.b16 %v1282, %v1282
    %v1315 = vpack.c.b16 %v1283, %v1283
    %v1316 = vpack.c.b16 %v1284, %v1284
    %v1317 = vpack.c.b16 %v1285, %v1285
    %v1318 = vpack.c.b16 %v1286, %v1286
    %v1319 = vpack.c.b16 %v1287, %v1287
    %v1320 = vpack.c.b16 %v1288, %v1288
    %1353 = vst [vmem:[#allocation5] sm:$0xf] %v1289
    %1354 = vst [vmem:[#allocation5 + $0x4] sm:$0xf] %v1290
    %1355 = vst [vmem:[#allocation5 + $0x8] sm:$0xf] %v1291
    %1356 = vst [vmem:[#allocation5 + $0xc] sm:$0xf] %v1292
    %1357 = vst [vmem:[#allocation5 + $0x10] sm:$0xf] %v1293
    %1358 = vst [vmem:[#allocation5 + $0x14] sm:$0xf] %v1294
    %1359 = vst [vmem:[#allocation5 + $0x18] sm:$0xf] %v1295
    %1360 = vst [vmem:[#allocation5 + $0x1c] sm:$0xf] %v1296
    %1361 = vst [vmem:[#allocation5 + $0x20] sm:$0xf] %v1297
    %1362 = vst [vmem:[#allocation5 + $0x24] sm:$0xf] %v1298
    %1363 = vst [vmem:[#allocation5 + $0x28] sm:$0xf] %v1299
    %1364 = vst [vmem:[#allocation5 + $0x2c] sm:$0xf] %v1300
    %1365 = vst [vmem:[#allocation5 + $0x30] sm:$0xf] %v1301
    %1366 = vst [vmem:[#allocation5 + $0x34] sm:$0xf] %v1302
    %1367 = vst [vmem:[#allocation5 + $0x38] sm:$0xf] %v1303
    %1368 = vst [vmem:[#allocation5 + $0x3c] sm:$0xf] %v1304
    %1369 = vst [vmem:[#allocation5 + $0x40] sm:$0xf] %v1305
    %1370 = vst [vmem:[#allocation5 + $0x44] sm:$0xf] %v1306
    %1371 = vst [vmem:[#allocation5 + $0x48] sm:$0xf] %v1307
    %1372 = vst [vmem:[#allocation5 + $0x4c] sm:$0xf] %v1308
    %1373 = vst [vmem:[#allocation5 + $0x50] sm:$0xf] %v1309
    %1374 = vst [vmem:[#allocation5 + $0x54] sm:$0xf] %v1310
    %1375 = vst [vmem:[#allocation5 + $0x58] sm:$0xf] %v1311
    %1376 = vst [vmem:[#allocation5 + $0x5c] sm:$0xf] %v1312
    %1377 = vst [vmem:[#allocation5 + $0x60] sm:$0xf] %v1313
    %1378 = vst [vmem:[#allocation5 + $0x64] sm:$0xf] %v1314
    %1379 = vst [vmem:[#allocation5 + $0x68] sm:$0xf] %v1315
    %1380 = vst [vmem:[#allocation5 + $0x6c] sm:$0xf] %v1316
    %1381 = vst [vmem:[#allocation5 + $0x70] sm:$0xf] %v1317
    %1382 = vst [vmem:[#allocation5 + $0x74] sm:$0xf] %v1318
    %1383 = vst [vmem:[#allocation5 + $0x78] sm:$0xf] %v1319
    %1384 = vst [vmem:[#allocation5 + $0x7c] sm:$0xf] %v1320
    // Predicated region
    $region42: #{tpu_custom_call.1} parent=1 // pred_check
      _
    $region43: #{tpu_custom_call.1} parent=1 // pred_check_branch
      %1386 = sbr.rel (0) target = $region45
    $region44: #{tpu_custom_call.1} parent=1 // pred_region
      %s1388 = ssub.s32 2048, 2048
      %1389 = vsyncadd [#allocation4], %s1388
      %s1390 = sshll.u32 [#allocation5], 4
      %s1391 = int_to_ptr.vmem [resolvable:$true] %s1390
      %1396 = dma.vmem_to_hbm [thread:$0]  %s1391, 2048, %s9, [#allocation4], 64, 64, 4
    $region45: #{tpu_custom_call.1} parent=1 // pred_fallthru
      _
    // Predicated region
    $region46: #{tpu_custom_call.1} parent=1 // pred_check
      _
    $region47: #{tpu_custom_call.1} parent=1 // pred_check_branch
      %1398 = sbr.rel (0) target = $region49
    $region48: #{tpu_custom_call.1} parent=1 // pred_region
      %1399 = dma.done [#allocation4], 2048
    $region49: #{tpu_custom_call.1} parent=1 // pred_fallthru
      _
    %1400 = vsyncpa [#allocation3], 1
    %1401 = vsyncpa [#allocation4], 1

</llo_original>
